<compile_context>
chip_gen: v7x
topology: tpu7x:2x2x1
jax: 0.10.0
libtpu: 0.0.40
codegen_flags: <defaults>
</compile_context>

<pallas_src>
import jax
import jax.numpy as jnp
from jax.experimental import pallas as pl
from jax.experimental.pallas import tpu as pltpu


def _round_up(n, m):
    return ((n + m - 1) // m) * m


def _sender_kernel(x_ref, w1_ref, b1_ref, w2_ref, b2_ref, out_ref):
    # In-kernel cast of x to the MXU input dtype (bf16 by default): no extra HBM pass.
    x = x_ref[...].astype(w1_ref.dtype)
    # fc1 on block-diagonal weights: each packed row computes P independent (1,D)@(D,D).
    h = jnp.dot(x, w1_ref[...], preferred_element_type=jnp.float32)
    h = h + b1_ref[...]
    h = jnp.maximum(h, 0.01 * h)            # leaky_relu(slope=0.01): mul+max, no select mask
    # fc2, again block-diagonal; f32 accumulate, bias add in f32.
    out = jnp.dot(h.astype(w2_ref.dtype), w2_ref[...],
                  preferred_element_type=jnp.float32)
    out_ref[...] = (out + b2_ref[...]).astype(out_ref.dtype)


def pack_sender_params(w1, b1, w2, b2, *, pack, mxu_dtype=jnp.bfloat16):
    """Build lane-dense block-diagonal params once (hoist out of the hot path).

    w1: (D, D), w2: (D, H) stored as (in_dim, out_dim) == PyTorch weight transposed.
    Returns W1_bd (P*D, P*D), b1_t (1, P*D), W2_bd (P*D, P*H), b2_t (1, P*H).
    """
    D = w1.shape[0]
    H = w2.shape[1]
    eye = jnp.eye(pack, dtype=jnp.float32)
    w1_bd = jnp.kron(eye, w1.astype(jnp.float32)).astype(mxu_dtype)
    w2_bd = jnp.kron(eye, w2.astype(jnp.float32)).astype(mxu_dtype)
    b1_t = jnp.tile(jnp.asarray(b1, jnp.float32).reshape(1, D), (1, pack))
    b2_t = jnp.tile(jnp.asarray(b2, jnp.float32).reshape(1, H), (1, pack))
    return w1_bd, b1_t, w2_bd, b2_t


def sender_forward(x, w1, b1, w2, b2, *, block_rows=2048, use_bf16=True,
                   out_dtype=jnp.float32):
    """x: (B, n_attributes, n_features); w1: (D, D); w2: (D, H). Returns (B, H)."""
    B = x.shape[0]
    D = x.shape[1] * x.shape[2]
    H = w2.shape[1]
    P = max(1, 128 // D)                      # batch rows folded into one 128-lane row
    mxu_dtype = jnp.bfloat16 if use_bf16 else jnp.float32

    # NOTE: if this layer is called repeatedly with fixed params, call pack_sender_params
    # once outside and thread the packed params through instead.
    w1_bd, b1_t, w2_bd, b2_t = pack_sender_params(
        w1, b1, w2, b2, pack=P, mxu_dtype=mxu_dtype)

    # (B, A, F) -> (B, D) -> (B/P, P*D): free bitcasts for row-major contiguous x.
    # A pad is needed only when B is not a multiple of P (at most P-1 extra rows).
    x2d = x.reshape(B, D)
    Bp = _round_up(B, P)
    if Bp != B:
        x2d = jnp.pad(x2d, ((0, Bp - B), (0, 0)))
    B4 = Bp // P
    x_pk = x2d.reshape(B4, P * D)

    # Packed-batch tile: whole array if tiny (full-dim block satisfies the (8,128) rule),
    # otherwise a multiple of 8 sublanes capped at block_rows.  For large batches force
    # >= 2 grid steps so the "parallel" batch axis can shard across both v7x TensorCores.
    if B4 <= 8:
        tb = B4
    else:
        tb = min(block_rows, _round_up(B4, 8))
        if B4 >= 128 and pl.cdiv(B4, tb) < 2:
            tb = _round_up(pl.cdiv(B4, 2), 8)
    grid = (pl.cdiv(B4, tb),)                 # ragged last block handled by Pallas masking

    out_pk = pl.pallas_call(
        _sender_kernel,
        out_shape=jax.ShapeDtypeStruct((B4, P * H), out_dtype),
        grid=grid,
        in_specs=[
            pl.BlockSpec((tb, P * D), lambda i: (i, 0)),      # x: tiled along packed batch
            pl.BlockSpec((P * D, P * D), lambda i: (0, 0)),   # W1_bd: resident (single DMA)
            pl.BlockSpec((1, P * D), lambda i: (0, 0)),       # b1 tiled: resident
            pl.BlockSpec((P * D, P * H), lambda i: (0, 0)),   # W2_bd: resident
            pl.BlockSpec((1, P * H), lambda i: (0, 0)),       # b2 tiled: resident
        ],
        out_specs=pl.BlockSpec((tb, P * H), lambda i: (i, 0)),
        compiler_params=pltpu.CompilerParams(
            dimension_semantics=("parallel",)),               # shard batch across TCs (v7x)
    )(x_pk, w1_bd, b1_t, w2_bd, b2_t)

    out = out_pk.reshape(Bp, H)               # free bitcast back to (rows, H)
    return out if Bp == B else out[:B]


def _reference(x, w1, b1, w2, b2, *, cast_bf16=False):
    x2d = x.reshape(x.shape[0], -1)
    w1c, w2c = w1, w2
    if cast_bf16:
        x2d = x2d.astype(jnp.bfloat16)
        w1c = w1.astype(jnp.bfloat16)
        w2c = w2.astype(jnp.bfloat16)
    h = jnp.dot(x2d, w1c, preferred_element_type=jnp.float32) + b1
    h = jnp.maximum(h, 0.01 * h)
    return jnp.dot(h.astype(w2c.dtype), w2c, preferred_element_type=jnp.float32) + b2


if __name__ == "__main__":
    # Shapes implied by the module: n_attributes=4, n_features=8 -> D=32, n_hidden=32.
    n_attributes, n_features, n_hidden = 4, 8, 32
    D = n_attributes * n_features

    key = jax.random.PRNGKey(0)
    k_x1, k_x2, k_w1, k_b1, k_w2, k_b2 = jax.random.split(key, 6)

    # PyTorch-style uniform(-1/sqrt(fan_in), 1/sqrt(fan_in)) params; weights stored as
    # (in_dim, out_dim) == transpose of PyTorch's (out_features, in_features).
    bound = 1.0 / jnp.sqrt(jnp.float32(D))
    w1 = jax.random.uniform(k_w1, (D, D), jnp.float32, -bound, bound)
    b1 = jax.random.uniform(k_b1, (D,), jnp.float32, -bound, bound)
    w2 = jax.random.uniform(k_w2, (D, n_hidden), jnp.float32, -bound, bound)
    b2 = jax.random.uniform(k_b2, (n_hidden,), jnp.float32, -bound, bound)

    # (1) Small case matching typical module usage: B=8 -> 2 packed rows, single grid step.
    x_small = jax.random.normal(k_x1, (8, n_attributes, n_features), jnp.float32)
    out_small = jax.block_until_ready(sender_forward(x_small, w1, b1, w2, b2))
    assert out_small.shape == (8, n_hidden)
    # Same-numerics (bf16-input) reference -> tight tolerance.
    assert jnp.allclose(out_small, _reference(x_small, w1, b1, w2, b2, cast_bf16=True),
                        atol=1e-3, rtol=1e-3)
    # Full-f32 reference -> loose tolerance (bf16 MXU inputs).
    assert jnp.allclose(out_small, _reference(x_small, w1, b1, w2, b2, cast_bf16=False),
                        atol=3e-2, rtol=3e-2)

    # (2) Ragged case: B=110 (not a multiple of P=4 -> tiny pad; 28 packed rows -> one
    #     partial 32-row block, exercising Pallas' masked last-block read/write).
    x_rag = jax.random.normal(k_x2, (110, n_attributes, n_features), jnp.float32)
    out_rag = jax.block_until_ready(sender_forward(x_rag, w1, b1, w2, b2))
    assert out_rag.shape == (110, n_hidden)
    assert jnp.allclose(out_rag, _reference(x_rag, w1, b1, w2, b2, cast_bf16=True),
                        atol=1e-3, rtol=1e-3)

    print("KERNEL_OK")
</pallas_src>

<mosaic_0001>
module attributes {stable_mosaic.version = 11 : i64} {
  func.func @_sender_kernel(%arg0: i32, %arg1: memref<2x128xf32, #tpu.memory_space<vmem>>, %arg2: memref<128x128xbf16, #tpu.memory_space<vmem>>, %arg3: memref<1x128xf32, #tpu.memory_space<vmem>>, %arg4: memref<128x128xbf16, #tpu.memory_space<vmem>>, %arg5: memref<1x128xf32, #tpu.memory_space<vmem>>, %arg6: memref<2x128xf32, #tpu.memory_space<vmem>>) attributes {dimension_semantics = [#tpu.dimension_semantics<parallel>], iteration_bounds = array<i64: 1>, scalar_prefetch = 0 : i64, scratch_operands = 0 : i64, tpu.core_type = #tpu.core_type<tc>, window_params = [{transform_indices = @transform_0, window_bounds = array<i64: 2, 128>}, {pipeline_mode = #tpu.pipeline_mode<synchronous>, transform_indices = @transform_1, window_bounds = array<i64: 128, 128>}, {pipeline_mode = #tpu.pipeline_mode<synchronous>, transform_indices = @transform_2, window_bounds = array<i64: 1, 128>}, {pipeline_mode = #tpu.pipeline_mode<synchronous>, transform_indices = @transform_3, window_bounds = array<i64: 128, 128>}, {pipeline_mode = #tpu.pipeline_mode<synchronous>, transform_indices = @transform_4, window_bounds = array<i64: 1, 128>}, {transform_indices = @transform_5, window_bounds = array<i64: 2, 128>}]} {
    %c0 = arith.constant 0 : index
    %c0_0 = arith.constant 0 : index
    %0 = vector.load %arg1[%c0, %c0_0] : memref<2x128xf32, #tpu.memory_space<vmem>>, vector<2x128xf32>
    %1 = arith.truncf %0 : vector<2x128xf32> to vector<2x128xbf16>
    %c0_1 = arith.constant 0 : index
    %c0_2 = arith.constant 0 : index
    %2 = vector.load %arg2[%c0_1, %c0_2] : memref<128x128xbf16, #tpu.memory_space<vmem>>, vector<128x128xbf16>
    %cst = arith.constant dense<0.000000e+00> : vector<2x128xf32>
    %3 = tpu.matmul %1, %2, %cst {dimension_numbers = #tpu.dot_dimension_numbers<[1], [0], [0], [1], [0, 0, 1, 1], [], []>} : vector<2x128xbf16>, vector<128x128xbf16>, vector<2x128xf32> -> vector<2x128xf32>
    %c0_3 = arith.constant 0 : index
    %c0_4 = arith.constant 0 : index
    %4 = vector.load %arg3[%c0_3, %c0_4] : memref<1x128xf32, #tpu.memory_space<vmem>>, vector<1x128xf32>
    %5 = vector.broadcast %4 : vector<1x128xf32> to vector<2x128xf32>
    %6 = arith.addf %3, %5 : vector<2x128xf32>
    %cst_5 = arith.constant 0.00999999977 : f32
    %7 = vector.broadcast %cst_5 : f32 to vector<2x128xf32>
    %8 = arith.mulf %7, %6 : vector<2x128xf32>
    %9 = arith.maximumf %6, %8 : vector<2x128xf32>
    %10 = arith.truncf %9 : vector<2x128xf32> to vector<2x128xbf16>
    %c0_6 = arith.constant 0 : index
    %c0_7 = arith.constant 0 : index
    %11 = vector.load %arg4[%c0_6, %c0_7] : memref<128x128xbf16, #tpu.memory_space<vmem>>, vector<128x128xbf16>
    %cst_8 = arith.constant dense<0.000000e+00> : vector<2x128xf32>
    %12 = tpu.matmul %10, %11, %cst_8 {dimension_numbers = #tpu.dot_dimension_numbers<[1], [0], [0], [1], [0, 0, 1, 1], [], []>} : vector<2x128xbf16>, vector<128x128xbf16>, vector<2x128xf32> -> vector<2x128xf32>
    %c0_9 = arith.constant 0 : index
    %c0_10 = arith.constant 0 : index
    %13 = vector.load %arg5[%c0_9, %c0_10] : memref<1x128xf32, #tpu.memory_space<vmem>>, vector<1x128xf32>
    %14 = vector.broadcast %13 : vector<1x128xf32> to vector<2x128xf32>
    %15 = arith.addf %12, %14 : vector<2x128xf32>
    %c0_11 = arith.constant 0 : index
    %c0_12 = arith.constant 0 : index
    %16 = vector.load %arg6[%c0_11, %c0_12] : memref<2x128xf32, #tpu.memory_space<vmem>>, vector<2x128xf32>
    tpu.vector_store %arg6[%c0_11, %c0_12], %15 {strides = array<i32>} : memref<2x128xf32, #tpu.memory_space<vmem>>, vector<2x128xf32>,
    return
  }
  func.func @transform_0(%arg0: i32) -> (i32, i32) {
    %c0_i32 = arith.constant 0 : i32
    %c0_i32_0 = arith.constant 0 : i32
    return %arg0, %c0_i32 : i32, i32
  }
  func.func @transform_1(%arg0: i32) -> (i32, i32) {
    %c0_i32 = arith.constant 0 : i32
    %c0_i32_0 = arith.constant 0 : i32
    %c0_i32_1 = arith.constant 0 : i32
    return %c0_i32, %c0_i32_0 : i32, i32
  }
  func.func @transform_2(%arg0: i32) -> (i32, i32) {
    %c0_i32 = arith.constant 0 : i32
    %c0_i32_0 = arith.constant 0 : i32
    %c0_i32_1 = arith.constant 0 : i32
    return %c0_i32, %c0_i32_0 : i32, i32
  }
  func.func @transform_3(%arg0: i32) -> (i32, i32) {
    %c0_i32 = arith.constant 0 : i32
    %c0_i32_0 = arith.constant 0 : i32
    %c0_i32_1 = arith.constant 0 : i32
    return %c0_i32, %c0_i32_0 : i32, i32
  }
  func.func @transform_4(%arg0: i32) -> (i32, i32) {
    %c0_i32 = arith.constant 0 : i32
    %c0_i32_0 = arith.constant 0 : i32
    %c0_i32_1 = arith.constant 0 : i32
    return %c0_i32, %c0_i32_0 : i32, i32
  }
  func.func @transform_5(%arg0: i32) -> (i32, i32) {
    %c0_i32 = arith.constant 0 : i32
    %c0_i32_0 = arith.constant 0 : i32
    return %arg0, %c0_i32 : i32, i32
  }
}

</mosaic_0001>

<llo_original>
// kernel: tpu_custom_call.1
$region0: #{tpu_custom_call.1}
  #allocation0 [shape = 'u32[]', space=smem, size = 0x4, offset = 0x4, fixed_abs, tag = 'smem constant byte address 0x4 - core index']
  #allocation1 [shape = 'u32[144,128]{1,0:T(1,128)}', space=vmem, size = 0x12000, scoped, tag = 'internal scratch']
  %s0 = inlined_call_operand.hbm [shape: f32[2,128], index: 0, kind: input, shape index: {}]
  %s1 = inlined_call_operand.hbm [shape: bf16[128,128], index: 1, kind: input, shape index: {}]
  %s2 = inlined_call_operand.vmem [shape: f32[1,128], index: 2, kind: input, shape index: {}]
  %s3 = inlined_call_operand.hbm [shape: bf16[128,128], index: 3, kind: input, shape index: {}]
  %s4 = inlined_call_operand.vmem [shape: f32[1,128], index: 4, kind: input, shape index: {}]
  %s5 = inlined_call_operand.hbm [shape: f32[2,128], index: 5, kind: output, shape index: {}]
  %s6 = sld [smem:[#allocation0]]
  $region42: #{tpu_custom_call.1} parent=0
    _
  %s8 = ssub.s32 1, %s6
  %s9 = scalar_select 0, %s8, %s6
  $region1: #{tpu_custom_call.1} parent=0
    #allocation2 [shape = 'u8[1024]{0}', space=vmem, size = 0x400, scoped, tag = 'input window, operand 0, single buffered']
    #allocation3 [shape = 's32[1]{0}', space=sflag, size = 0x4, scoped, tag = 'scoped memory for tpu_custom_call.1']
    #allocation4 [shape = 's32[1]{0}', space=sflag, size = 0x4, scoped, tag = 'scoped memory for tpu_custom_call.1']
    #allocation5 [shape = 'u8[32768]{0}', space=vmem, size = 0x8000, scoped, tag = 'input window, operand 1, single buffered']
    #allocation6 [shape = 's32[1]{0}', space=sflag, size = 0x4, scoped, tag = 'scoped memory for tpu_custom_call.1']
    #allocation7 [shape = 'u8[32768]{0}', space=vmem, size = 0x8000, scoped, tag = 'input window, operand 3, single buffered']
    #allocation8 [shape = 'u8[1024]{0}', space=vmem, size = 0x400, scoped, tag = 'output window, operand 0, single buffered']
    %10 = vsyncpa [#allocation3], 0
    %11 = vsyncpa [#allocation6], 0
    %12 = vsyncpa [#allocation4], 0
    // Predicated region
    $region2: #{tpu_custom_call.1} parent=1 // pred_check
      _
    $region3: #{tpu_custom_call.1} parent=1 // pred_check_branch
      %14 = sbr.rel (0) target = $region5
    $region4: #{tpu_custom_call.1} parent=1 // pred_region
      %s16 = ssub.s32 32, 32
      %17 = vsyncadd [#allocation3], %s16
      %s19 = sshll.u32 [#allocation2], 4
      %s20 = int_to_ptr.vmem [resolvable:$true] %s19
      %22 = dma.hbm_to_vmem [thread:$0]  %s0, 32, %s20, [#allocation3]
    $region5: #{tpu_custom_call.1} parent=1 // pred_fallthru
      _
    // Predicated region
    $region6: #{tpu_custom_call.1} parent=1 // pred_check
      _
    $region7: #{tpu_custom_call.1} parent=1 // pred_check_branch
      %24 = sbr.rel (0) target = $region9
    $region8: #{tpu_custom_call.1} parent=1 // pred_region
      %s26 = ssub.s32 1024, 1024
      %27 = vsyncadd [#allocation6], %s26
      %s28 = sshll.u32 [#allocation5], 4
      %s29 = int_to_ptr.vmem [resolvable:$true] %s28
      %34 = dma.hbm_to_vmem [thread:$0]  %s1, 1024, %s29, [#allocation6], 64, 64, 4
    $region9: #{tpu_custom_call.1} parent=1 // pred_fallthru
      _
    // Predicated region
    $region10: #{tpu_custom_call.1} parent=1 // pred_check
      _
    $region11: #{tpu_custom_call.1} parent=1 // pred_check_branch
      %36 = sbr.rel (0) target = $region13
    $region12: #{tpu_custom_call.1} parent=1 // pred_region
      _
    $region13: #{tpu_custom_call.1} parent=1 // pred_fallthru
      _
    // Predicated region
    $region14: #{tpu_custom_call.1} parent=1 // pred_check
      _
    $region15: #{tpu_custom_call.1} parent=1 // pred_check_branch
      %38 = sbr.rel (0) target = $region17
    $region16: #{tpu_custom_call.1} parent=1 // pred_region
      %s40 = ssub.s32 1024, 1024
      %41 = vsyncadd [#allocation6], %s40
      %s42 = sshll.u32 [#allocation7], 4
      %s43 = int_to_ptr.vmem [resolvable:$true] %s42
      %48 = dma.hbm_to_vmem [thread:$0]  %s3, 1024, %s43, [#allocation6], 64, 64, 4
    $region17: #{tpu_custom_call.1} parent=1 // pred_fallthru
      _
    // Predicated region
    $region18: #{tpu_custom_call.1} parent=1 // pred_check
      _
    $region19: #{tpu_custom_call.1} parent=1 // pred_check_branch
      %50 = sbr.rel (0) target = $region21
    $region20: #{tpu_custom_call.1} parent=1 // pred_region
      _
    $region21: #{tpu_custom_call.1} parent=1 // pred_fallthru
      _
    // Predicated region
    $region22: #{tpu_custom_call.1} parent=1 // pred_check
      _
    $region23: #{tpu_custom_call.1} parent=1 // pred_check_branch
      %52 = sbr.rel (0) target = $region25
    $region24: #{tpu_custom_call.1} parent=1 // pred_region
      %53 = dma.done [#allocation3], 32
    $region25: #{tpu_custom_call.1} parent=1 // pred_fallthru
      _
    // Predicated region
    $region26: #{tpu_custom_call.1} parent=1 // pred_check
      _
    $region27: #{tpu_custom_call.1} parent=1 // pred_check_branch
      %55 = sbr.rel (0) target = $region29
    $region28: #{tpu_custom_call.1} parent=1 // pred_region
      %56 = dma.done [#allocation6], 1024
    $region29: #{tpu_custom_call.1} parent=1 // pred_fallthru
      _
    // Predicated region
    $region30: #{tpu_custom_call.1} parent=1 // pred_check
      _
    $region31: #{tpu_custom_call.1} parent=1 // pred_check_branch
      %58 = sbr.rel (0) target = $region33
    $region32: #{tpu_custom_call.1} parent=1 // pred_region
      %59 = dma.done [#allocation6], 1024
    $region33: #{tpu_custom_call.1} parent=1 // pred_fallthru
      _
    %v61 = vld [vmem:[#allocation2] sm:$0x3]
    %v62 = vpack.c.bf16 %v61, %v61
    %v63 = vld [vmem:[#allocation5] sm:$0xf]
    %v64 = vld [vmem:[#allocation5 + $0x4] sm:$0xf]
    %v65 = vld [vmem:[#allocation5 + $0x8] sm:$0xf]
    %v66 = vld [vmem:[#allocation5 + $0xc] sm:$0xf]
    %v67 = vld [vmem:[#allocation5 + $0x10] sm:$0xf]
    %v68 = vld [vmem:[#allocation5 + $0x14] sm:$0xf]
    %v69 = vld [vmem:[#allocation5 + $0x18] sm:$0xf]
    %v70 = vld [vmem:[#allocation5 + $0x1c] sm:$0xf]
    %v71 = vld [vmem:[#allocation5 + $0x20] sm:$0xf]
    %v72 = vld [vmem:[#allocation5 + $0x24] sm:$0xf]
    %v73 = vld [vmem:[#allocation5 + $0x28] sm:$0xf]
    %v74 = vld [vmem:[#allocation5 + $0x2c] sm:$0xf]
    %v75 = vld [vmem:[#allocation5 + $0x30] sm:$0xf]
    %v76 = vld [vmem:[#allocation5 + $0x34] sm:$0xf]
    %v77 = vld [vmem:[#allocation5 + $0x38] sm:$0xf]
    %v78 = vld [vmem:[#allocation5 + $0x3c] sm:$0xf]
    %v79 = vld [vmem:[%s2] sm:$0x1]
    %v81 = vlaneseq
    %v82 = vshrl.u32 %v81, 7
    %v83 = vsub.s32 0, %v82
    %v84 = vrot.slane %v79, %v83
    %v102 = vunpack.c.l.b16 %v63
    %v103 = vunpack.c.l.b16 %v64
    %v104 = vunpack.c.l.b16 %v65
    %v105 = vunpack.c.l.b16 %v66
    %v106 = vunpack.c.l.b16 %v67
    %v107 = vunpack.c.l.b16 %v68
    %v108 = vunpack.c.l.b16 %v69
    %v109 = vunpack.c.l.b16 %v70
    %v110 = vunpack.c.l.b16 %v71
    %v111 = vunpack.c.l.b16 %v72
    %v112 = vunpack.c.l.b16 %v73
    %v113 = vunpack.c.l.b16 %v74
    %v114 = vunpack.c.l.b16 %v75
    %v115 = vunpack.c.l.b16 %v76
    %v116 = vunpack.c.l.b16 %v77
    %v117 = vunpack.c.l.b16 %v78
    %v118 = vpack.c.b16 %v103, %v102
    %v119 = vpack.c.b16 %v105, %v104
    %v120 = vpack.c.b16 %v107, %v106
    %v121 = vpack.c.b16 %v109, %v108
    %v122 = vpack.c.b16 %v111, %v110
    %v123 = vpack.c.b16 %v113, %v112
    %v124 = vpack.c.b16 %v115, %v114
    %v125 = vpack.c.b16 %v117, %v116
    %134 = vmatprep.subr.bf16.mxu0 0
    %135 = vmatpush1.bf16.msra.mxu0 %v118
    %136 = vmatprep.subr.bf16.mxu0 0
    %137 = vmatpush1.bf16.msra.mxu0 %v119
    %138 = vmatprep.subr.bf16.mxu0 0
    %139 = vmatpush1.bf16.msra.mxu0 %v120
    %140 = vmatprep.subr.bf16.mxu0 0
    %141 = vmatpush1.bf16.msra.mxu0 %v121
    %142 = vmatprep.subr.bf16.mxu0 0
    %143 = vmatpush1.bf16.msra.mxu0 %v122
    %144 = vmatprep.subr.bf16.mxu0 0
    %145 = vmatpush1.bf16.msra.mxu0 %v123
    %146 = vmatprep.subr.bf16.mxu0 0
    %147 = vmatpush1.bf16.msra.mxu0 %v124
    %148 = vmatprep.subr.bf16.mxu0 0
    %149 = vmatpush1.bf16.msra.mxu0 %v125
    %150 = vmatprep.subr.bf16.mxu0 0
    %151 = vmatpush1.bf16.msra.mxu0 0
    %152 = vmatprep.subr.bf16.mxu0 0
    %153 = vmatpush1.bf16.msra.mxu0 0
    %154 = vmatprep.subr.bf16.mxu0 0
    %155 = vmatpush1.bf16.msra.mxu0 0
    %156 = vmatprep.subr.bf16.mxu0 0
    %157 = vmatpush1.bf16.msra.mxu0 0
    %158 = vmatprep.subr.bf16.mxu0 0
    %159 = vmatpush1.bf16.msra.mxu0 0
    %160 = vmatprep.subr.bf16.mxu0 0
    %161 = vmatpush1.bf16.msra.mxu0 0
    %162 = vmatprep.subr.bf16.mxu0 0
    %163 = vmatpush1.bf16.msra.mxu0 0
    %164 = vmatprep.subr.bf16.mxu0 0
    %165 = vmatpush1.bf16.msra.mxu0 0
    %166 = vmatprep.mubr.bf16.mxu0 0
    %167 = vmatmul.mubr.bf16.gmra.mrb[0].mxu0 %v62
    %v168 = vpop.f32.mrb[0].mxu0
    %v169 = vadd.f32 %v84, %v168
    %v170 = vpop.f32.mrb[0].mxu0
    %v171 = vpop.f32.mrb[0].mxu0
    %v172 = vpop.f32.mrb[0].mxu0
    %173 = vdwg.mxu0
    %v174 = vmul.f32 %v169, 0.01
    %v175 = vmax.f32 %v169, %v174
    %v176 = vpack.c.bf16 %v175, %v175
    %v177 = vld [vmem:[#allocation7] sm:$0xf]
    %v178 = vld [vmem:[#allocation7 + $0x4] sm:$0xf]
    %v179 = vld [vmem:[#allocation7 + $0x8] sm:$0xf]
    %v180 = vld [vmem:[#allocation7 + $0xc] sm:$0xf]
    %v181 = vld [vmem:[#allocation7 + $0x10] sm:$0xf]
    %v182 = vld [vmem:[#allocation7 + $0x14] sm:$0xf]
    %v183 = vld [vmem:[#allocation7 + $0x18] sm:$0xf]
    %v184 = vld [vmem:[#allocation7 + $0x1c] sm:$0xf]
    %v185 = vld [vmem:[#allocation7 + $0x20] sm:$0xf]
    %v186 = vld [vmem:[#allocation7 + $0x24] sm:$0xf]
    %v187 = vld [vmem:[#allocation7 + $0x28] sm:$0xf]
    %v188 = vld [vmem:[#allocation7 + $0x2c] sm:$0xf]
    %v189 = vld [vmem:[#allocation7 + $0x30] sm:$0xf]
    %v190 = vld [vmem:[#allocation7 + $0x34] sm:$0xf]
    %v191 = vld [vmem:[#allocation7 + $0x38] sm:$0xf]
    %v192 = vld [vmem:[#allocation7 + $0x3c] sm:$0xf]
    %v193 = vld [vmem:[%s4] sm:$0x1]
    %v195 = vlaneseq
    %v196 = vshrl.u32 %v195, 7
    %v197 = vsub.s32 0, %v196
    %v198 = vrot.slane %v193, %v197
    %v216 = vunpack.c.l.b16 %v177
    %v217 = vunpack.c.l.b16 %v178
    %v218 = vunpack.c.l.b16 %v179
    %v219 = vunpack.c.l.b16 %v180
    %v220 = vunpack.c.l.b16 %v181
    %v221 = vunpack.c.l.b16 %v182
    %v222 = vunpack.c.l.b16 %v183
    %v223 = vunpack.c.l.b16 %v184
    %v224 = vunpack.c.l.b16 %v185
    %v225 = vunpack.c.l.b16 %v186
    %v226 = vunpack.c.l.b16 %v187
    %v227 = vunpack.c.l.b16 %v188
    %v228 = vunpack.c.l.b16 %v189
    %v229 = vunpack.c.l.b16 %v190
    %v230 = vunpack.c.l.b16 %v191
    %v231 = vunpack.c.l.b16 %v192
    %v232 = vpack.c.b16 %v217, %v216
    %v233 = vpack.c.b16 %v219, %v218
    %v234 = vpack.c.b16 %v221, %v220
    %v235 = vpack.c.b16 %v223, %v222
    %v236 = vpack.c.b16 %v225, %v224
    %v237 = vpack.c.b16 %v227, %v226
    %v238 = vpack.c.b16 %v229, %v228
    %v239 = vpack.c.b16 %v231, %v230
    %248 = vmatprep.subr.bf16.mxu0 0
    %249 = vmatpush1.bf16.msra.mxu0 %v232
    %250 = vmatprep.subr.bf16.mxu0 0
    %251 = vmatpush1.bf16.msra.mxu0 %v233
    %252 = vmatprep.subr.bf16.mxu0 0
    %253 = vmatpush1.bf16.msra.mxu0 %v234
    %254 = vmatprep.subr.bf16.mxu0 0
    %255 = vmatpush1.bf16.msra.mxu0 %v235
    %256 = vmatprep.subr.bf16.mxu0 0
    %257 = vmatpush1.bf16.msra.mxu0 %v236
    %258 = vmatprep.subr.bf16.mxu0 0
    %259 = vmatpush1.bf16.msra.mxu0 %v237
    %260 = vmatprep.subr.bf16.mxu0 0
    %261 = vmatpush1.bf16.msra.mxu0 %v238
    %262 = vmatprep.subr.bf16.mxu0 0
    %263 = vmatpush1.bf16.msra.mxu0 %v239
    %264 = vmatprep.subr.bf16.mxu0 0
    %265 = vmatpush1.bf16.msra.mxu0 0
    %266 = vmatprep.subr.bf16.mxu0 0
    %267 = vmatpush1.bf16.msra.mxu0 0
    %268 = vmatprep.subr.bf16.mxu0 0
    %269 = vmatpush1.bf16.msra.mxu0 0
    %270 = vmatprep.subr.bf16.mxu0 0
    %271 = vmatpush1.bf16.msra.mxu0 0
    %272 = vmatprep.subr.bf16.mxu0 0
    %273 = vmatpush1.bf16.msra.mxu0 0
    %274 = vmatprep.subr.bf16.mxu0 0
    %275 = vmatpush1.bf16.msra.mxu0 0
    %276 = vmatprep.subr.bf16.mxu0 0
    %277 = vmatpush1.bf16.msra.mxu0 0
    %278 = vmatprep.subr.bf16.mxu0 0
    %279 = vmatpush1.bf16.msra.mxu0 0
    %280 = vmatprep.mubr.bf16.mxu0 0
    %281 = vmatmul.mubr.bf16.gmra.mrb[0].mxu0 %v176
    %v282 = vpop.f32.mrb[0].mxu0
    %v283 = vadd.f32 %v198, %v282
    %v284 = vpop.f32.mrb[0].mxu0
    %v285 = vpop.f32.mrb[0].mxu0
    %v286 = vpop.f32.mrb[0].mxu0
    %287 = vdwg.mxu0
    %288 = vst [vmem:[#allocation8] sm:$0x3] %v283
    // Predicated region
    $region34: #{tpu_custom_call.1} parent=1 // pred_check
      _
    $region35: #{tpu_custom_call.1} parent=1 // pred_check_branch
      %290 = sbr.rel (0) target = $region37
    $region36: #{tpu_custom_call.1} parent=1 // pred_region
      %s292 = ssub.s32 32, 32
      %293 = vsyncadd [#allocation4], %s292
      %s295 = sshll.u32 [#allocation8], 4
      %s296 = int_to_ptr.vmem [resolvable:$true] %s295
      %298 = dma.vmem_to_hbm [thread:$0]  %s296, 32, %s5, [#allocation4]
    $region37: #{tpu_custom_call.1} parent=1 // pred_fallthru
      _
    // Predicated region
    $region38: #{tpu_custom_call.1} parent=1 // pred_check
      _
    $region39: #{tpu_custom_call.1} parent=1 // pred_check_branch
      %300 = sbr.rel (0) target = $region41
    $region40: #{tpu_custom_call.1} parent=1 // pred_region
      %301 = dma.done [#allocation4], 32
    $region41: #{tpu_custom_call.1} parent=1 // pred_fallthru
      _
    %302 = vsyncpa [#allocation3], 1
    %303 = vsyncpa [#allocation6], 1
    %304 = vsyncpa [#allocation4], 1

</llo_original>
